<compile_context>
chip_gen: v5e
topology: v5e:2x2
jax: 0.10.0
libtpu: 0.0.40
codegen_flags: <defaults>
</compile_context>

<pallas_src>
import functools

import jax
import jax.numpy as jnp
from jax.experimental import pallas as pl
from jax.experimental.pallas import tpu as pltpu

LANE = 128


def _round_up(v, mult):
    return -(-v // mult) * mult


def conv_deep_set_kernel(x_ref, t_ref, y_ref, neg_inv_ref, w_ref, b_ref, o_ref, acc_ref,
                         *, shared_scale: bool, use_bf16_exp: bool, n_tiled: bool):
    # x_ref:       (bt, tn, 1)    observation locations (column / sublane-oriented)
    # t_ref:       (bt, 1, tm)    target locations (row / lane-dense along m)
    # y_ref:       (bt, tn, Cin)  observation values (no density channel)
    # neg_inv_ref: (C,) SMEM      -0.5 / exp(sigma)^2 per channel (channel 0 = density)
    # w_ref:       (Cout, C)      point-wise linear weight, transposed
    # b_ref:       (Cout, 1)      point-wise linear bias (column)
    # o_ref:       (bt, Cout, tm) output, lane-dense along m
    # acc_ref:     (bt, C, tm)    per-channel sums accumulated over n tiles (scratch)
    bt = x_ref.shape[0]
    C = neg_inv_ref.shape[0]

    def exp_(arg):
        if use_bf16_exp:  # v6e/v7x: bf16 EUP ~2x f32 exp throughput
            return jnp.exp(arg.astype(jnp.bfloat16)).astype(jnp.float32)
        return jnp.exp(arg)

    def finalize(b, rows):
        # density normalisation + point-wise linear, accumulated on the VPU
        density = rows[0]                                   # (1, tm)
        inv_den = 1.0 / (density + 1e-8)                    # exact, matches reference
        out = b_ref[...] + w_ref[:, 0:1] * density          # (Cout, tm)
        for c in range(1, C):                                # static loop, C is small
            out = out + w_ref[:, c:c + 1] * (rows[c] * inv_den)
        o_ref[b] = out.astype(o_ref.dtype)

    if n_tiled:
        @pl.when(pl.program_id(2) == 0)
        def _():
            acc_ref[...] = jnp.zeros_like(acc_ref)

    for b in range(bt):                                      # static unroll, bt <= 4
        x_col = x_ref[b].astype(jnp.float32)                 # (tn, 1)
        t_row = t_ref[b].astype(jnp.float32)                 # (1, tm)
        yb = y_ref[b].astype(jnp.float32)                    # (tn, Cin)
        dists = (x_col - t_row) ** 2                         # (tn, tm): n sublanes, m lanes

        if shared_scale:
            # all channels share one length scale -> one exp, reused C times
            w0 = exp_(dists * neg_inv_ref[0])
            rows = [jnp.sum(w0, axis=0, keepdims=True)]      # density channel (y == 1)
            for c in range(1, C):
                rows.append(jnp.sum(w0 * yb[:, c - 1:c], axis=0, keepdims=True))
        else:
            rows = [jnp.sum(exp_(dists * neg_inv_ref[0]), axis=0, keepdims=True)]
            for c in range(1, C):
                rows.append(jnp.sum(exp_(dists * neg_inv_ref[c]) * yb[:, c - 1:c],
                                    axis=0, keepdims=True))

        if n_tiled:
            for c in range(C):
                acc_ref[b, c:c + 1, :] = acc_ref[b, c:c + 1, :] + rows[c]
        else:
            finalize(b, rows)

    if n_tiled:
        @pl.when(pl.program_id(2) == pl.num_programs(2) - 1)
        def _():
            for b in range(bt):
                finalize(b, [acc_ref[b, c:c + 1, :] for c in range(C)])


def conv_deep_set(x, y, t, sigma, weight, bias, *,
                  shared_scale=None, use_bf16_exp=False, channels_first=False,
                  tm_cap=2048, tn_cap=512):
    """Pallas ConvDeepSet forward.

    x: (B, n, 1), y: (B, n, Cin), t: (B, m, 1)
    sigma: (Cin+1,) log length-scales, weight: (Cin+1, Cout), bias: (Cout,)
    Returns (B, m, Cout) f32, or (B, Cout, m) if channels_first=True.
    """
    B, n, _ = x.shape
    m = t.shape[1]
    Cin = y.shape[2]
    C = Cin + 1
    Cout = weight.shape[1]
    f32 = jnp.float32

    def keep(a):  # bf16 stays bf16 on the wire (half HBM traffic); upcast in-kernel
        return a if a.dtype == jnp.bfloat16 else a.astype(f32)

    x_col = keep(x)                                          # (B, n, 1)
    y_nat = keep(y)                                          # (B, n, Cin)
    t_row = jnp.transpose(keep(t), (0, 2, 1))                # (B, 1, m) lane-dense

    # ---- n (context) tiling: third "arbitrary" grid axis with an accumulator ----
    if n <= tn_cap:
        tn, n_pad = n, n
    else:
        tn = tn_cap                                          # multiple of 8
        n_pad = _round_up(n, tn)
        # sentinel x: RBF weight of padded rows underflows to exactly 0
        x_col = jnp.pad(x_col, ((0, 0), (0, n_pad - n), (0, 0)), constant_values=1e9)
        y_nat = jnp.pad(y_nat, ((0, 0), (0, n_pad - n), (0, 0)))
    grid_n = n_pad // tn

    # ---- m tiling: always lane-dense (multiple of 128), sized from a VMEM budget ----
    budget = 20 * 1024 * 1024                                # fits v7x scoped VMEM w/ headroom
    bt_est = 4
    per_tm = 4 * (2 * bt_est * (1 + Cout) + bt_est * C + 4 * tn)   # bytes per lane column
    fixed = 4 * (2 * bt_est * tn * (1 + Cin))                       # x / y double-buffered
    tm_fit = max(LANE, ((budget - fixed) // per_tm) // LANE * LANE)
    tm = int(min(tm_cap, _round_up(m, LANE), tm_fit))
    m_pad = _round_up(m, tm)
    if m_pad > m:
        t_row = jnp.pad(t_row, ((0, 0), (0, 0), (0, m_pad - m)))
    grid_m = m_pad // tm

    # ---- batch folding: amortise per-step overhead; cap unroll at 4; keep >= 2 steps ----
    if C * tn * tm <= (1 << 15):
        bt = next(b for b in (4, 2, 1) if B % b == 0)
    else:
        bt = 1
    while bt > 1 and (B // bt) * grid_m * grid_n < 2:        # keep both v7x TCs busy
        bt //= 2
    grid_b = B // bt

    # ---- parameters ----
    scales = jnp.exp(sigma.astype(f32))
    neg_inv = (-0.5 / (scales * scales)).astype(f32)         # (C,) ready-to-use SMEM scalars
    if shared_scale is None:
        try:  # trace-time check; under jit tracing fall back to the general path
            shared_scale = bool(jnp.all(neg_inv == neg_inv[0]))
        except jax.errors.ConcretizationTypeError:
            shared_scale = False
    w_t = jnp.transpose(weight.astype(f32))                  # (Cout, C)
    bias_col = bias.astype(f32).reshape(Cout, 1)             # (Cout, 1)

    # explicit VMEM limit derived from the actual working set (leave compiler headroom)
    ws = 4 * (2 * bt * (tn + tm + tn * Cin + Cout * tm) + bt * C * tm + 4 * tn * tm)
    vmem_limit = int(min(40 * 1024 * 1024, max(16 * 1024 * 1024, 2 * ws)))

    grid_spec = pltpu.PrefetchScalarGridSpec(
        num_scalar_prefetch=0,
        grid=(grid_b, grid_m, grid_n),
        in_specs=[
            pl.BlockSpec((bt, tn, 1), lambda i, j, k: (i, k, 0)),       # x (column)
            pl.BlockSpec((bt, 1, tm), lambda i, j, k: (i, 0, j)),       # t (lane-dense row)
            pl.BlockSpec((bt, tn, Cin), lambda i, j, k: (i, k, 0)),     # y
            pl.BlockSpec(memory_space=pltpu.MemorySpace.SMEM),          # -0.5 / scale^2
            pl.BlockSpec((Cout, C), lambda i, j, k: (0, 0)),            # W^T
            pl.BlockSpec((Cout, 1), lambda i, j, k: (0, 0)),            # bias
        ],
        out_specs=pl.BlockSpec((bt, Cout, tm), lambda i, j, k: (i, 0, j)),
        scratch_shapes=[pltpu.VMEM((bt, C, tm), jnp.float32)],          # per-channel sums
    )

    out_t = pl.pallas_call(
        functools.partial(conv_deep_set_kernel,
                          shared_scale=bool(shared_scale),
                          use_bf16_exp=use_bf16_exp,
                          n_tiled=grid_n > 1),
        out_shape=jax.ShapeDtypeStruct((B, Cout, m_pad), jnp.float32),
        grid_spec=grid_spec,
        compiler_params=pltpu.CompilerParams(
            dimension_semantics=("parallel", "parallel", "arbitrary"),
            vmem_limit_bytes=vmem_limit,
        ),
    )(x_col, t_row, y_nat, neg_inv, w_t, bias_col)

    if channels_first:
        return out_t[:, :, :m]                               # (B, Cout, m): no XLA transpose
    return jnp.transpose(out_t, (0, 2, 1))[:, :m, :]         # (B, m, Cout)


def conv_deep_set_ref(x, y, t, sigma, weight, bias):
    """Pure-JAX reference matching the PyTorch ConvDeepSet.forward exactly."""
    scales = jnp.exp(sigma)
    dists = (x - jnp.transpose(t, (0, 2, 1))) ** 2           # (B, n, m)
    wt = jnp.exp(-0.5 * dists[..., None] / scales ** 2)      # (B, n, m, C)
    density = jnp.ones(y.shape[:2] + (1,), y.dtype)
    y_aug = jnp.concatenate([density, y], axis=2)            # (B, n, C)
    y_out = (y_aug[:, :, None, :] * wt).sum(axis=1)          # (B, m, C)
    d, conv = y_out[..., :1], y_out[..., 1:]
    y_out = jnp.concatenate([d, conv / (d + 1e-8)], axis=-1) # (B, m, C)
    return y_out @ weight + bias                             # (B, m, Cout)


if __name__ == "__main__":
    # Small shapes consistent with ConvDeepSet usage inside ConvCNP (1-D data).
    B, n, m = 2, 8, 16          # batch, context points, grid points
    Cin, Cout = 4, 8            # data channels, rho.in_channels
    C = Cin + 1                 # +1 density channel
    points_per_unit = 64
    init_length_scale = 2.0 / points_per_unit

    key = jax.random.PRNGKey(0)
    kx, ky, kt, kw = jax.random.split(key, 4)
    x = jax.random.uniform(kx, (B, n, 1), jnp.float32)
    y = jax.random.normal(ky, (B, n, Cin), jnp.float32)
    t = jax.random.uniform(kt, (B, m, 1), jnp.float32)

    # deterministic parameter init (synthetic; module __init__ gives the shapes)
    sigma = jnp.log(init_length_scale) * jnp.ones((C,), jnp.float32)   # nn.Parameter
    weight = 0.1 * jax.random.normal(kw, (C, Cout), jnp.float32)       # Linear(C, Cout) weight^T
    bias = jnp.zeros((Cout,), jnp.float32)                             # Linear bias

    # default: f32 exp so the 1e-4 reference check holds; set use_bf16_exp=True for
    # production runs on v6e/v7x (keep it False on v5e).
    out = conv_deep_set(x, y, t, sigma, weight, bias)
    out = jax.block_until_ready(out)

    ref = conv_deep_set_ref(x, y, t, sigma, weight, bias)
    if not jnp.allclose(out, ref, atol=1e-4, rtol=1e-4):
        raise AssertionError("Pallas ConvDeepSet does not match reference")

    print("KERNEL_OK")
</pallas_src>

<mosaic_0001>
module attributes {stable_mosaic.version = 11 : i64} {
  func.func @conv_deep_set_kernel(%arg0: i32, %arg1: i32, %arg2: i32, %arg3: memref<1x8x1xf32, #tpu.memory_space<vmem>>, %arg4: memref<1x1x128xf32, #tpu.memory_space<vmem>>, %arg5: memref<1x8x4xf32, #tpu.memory_space<vmem>>, %arg6: memref<5xf32, #tpu.memory_space<smem>>, %arg7: memref<8x5xf32, #tpu.memory_space<vmem>>, %arg8: memref<8x1xf32, #tpu.memory_space<vmem>>, %arg9: memref<1x8x128xf32, #tpu.memory_space<vmem>>, %arg10: memref<1x5x128xf32, #tpu.memory_space<vmem>>) attributes {dimension_semantics = [#tpu.dimension_semantics<parallel>, #tpu.dimension_semantics<parallel>, #tpu.dimension_semantics<arbitrary>], iteration_bounds = array<i64: 2, 1, 1>, scalar_prefetch = 0 : i64, scratch_operands = 1 : i64, tpu.core_type = #tpu.core_type<tc>, window_params = [{transform_indices = @transform_0, window_bounds = array<i64: 1, 8, 1>}, {transform_indices = @transform_1, window_bounds = array<i64: 1, 1, 128>}, {transform_indices = @transform_2, window_bounds = array<i64: 1, 8, 4>}, {transform_indices = @transform_3, window_bounds = array<i64: 5>}, {pipeline_mode = #tpu.pipeline_mode<synchronous>, transform_indices = @transform_4, window_bounds = array<i64: 8, 5>}, {pipeline_mode = #tpu.pipeline_mode<synchronous>, transform_indices = @transform_5, window_bounds = array<i64: 8, 1>}, {transform_indices = @transform_6, window_bounds = array<i64: 1, 8, 128>}]} {
    %c0 = arith.constant 0 : index
    %c0_0 = arith.constant 0 : index
    %c0_1 = arith.constant 0 : index
    %0 = vector.load %arg3[%c0, %c0_0, %c0_1] : memref<1x8x1xf32, #tpu.memory_space<vmem>>, vector<1x8x1xf32>
    %1 = vector.shape_cast %0 : vector<1x8x1xf32> to vector<8x1xf32>
    %c0_2 = arith.constant 0 : index
    %c0_3 = arith.constant 0 : index
    %c0_4 = arith.constant 0 : index
    %2 = vector.load %arg4[%c0_2, %c0_3, %c0_4] : memref<1x1x128xf32, #tpu.memory_space<vmem>>, vector<1x1x128xf32>
    %3 = vector.shape_cast %2 : vector<1x1x128xf32> to vector<1x128xf32>
    %c0_5 = arith.constant 0 : index
    %c0_6 = arith.constant 0 : index
    %c0_7 = arith.constant 0 : index
    %4 = vector.load %arg5[%c0_5, %c0_6, %c0_7] : memref<1x8x4xf32, #tpu.memory_space<vmem>>, vector<1x8x4xf32>
    %5 = vector.shape_cast %4 : vector<1x8x4xf32> to vector<8x4xf32>
    %6 = vector.broadcast %1 : vector<8x1xf32> to vector<8x128xf32>
    %7 = vector.broadcast %3 : vector<1x128xf32> to vector<8x128xf32>
    %8 = arith.subf %6, %7 : vector<8x128xf32>
    %9 = arith.mulf %8, %8 : vector<8x128xf32>
    %c0_8 = arith.constant 0 : index
    %10 = memref.load %arg6[%c0_8] : memref<5xf32, #tpu.memory_space<smem>>
    %11 = vector.broadcast %10 : f32 to vector<8x128xf32>
    %12 = arith.mulf %9, %11 : vector<8x128xf32>
    %13 = math.exp %12 : vector<8x128xf32>
    %cst = arith.constant dense<0.000000e+00> : vector<128xf32>
    %14 = vector.multi_reduction <add>, %13, %cst [0] : vector<8x128xf32> to vector<128xf32>
    %15 = vector.shape_cast %14 : vector<128xf32> to vector<1x128xf32>
    %16 = vector.extract_strided_slice %5 {offsets = [0, 0], sizes = [8, 1], strides = [1, 1]} : vector<8x4xf32> to vector<8x1xf32>
    %17 = vector.broadcast %16 : vector<8x1xf32> to vector<8x128xf32>
    %18 = arith.mulf %13, %17 : vector<8x128xf32>
    %cst_9 = arith.constant dense<0.000000e+00> : vector<128xf32>
    %19 = vector.multi_reduction <add>, %18, %cst_9 [0] : vector<8x128xf32> to vector<128xf32>
    %20 = vector.shape_cast %19 : vector<128xf32> to vector<1x128xf32>
    %21 = vector.extract_strided_slice %5 {offsets = [0, 1], sizes = [8, 1], strides = [1, 1]} : vector<8x4xf32> to vector<8x1xf32>
    %22 = vector.broadcast %21 : vector<8x1xf32> to vector<8x128xf32>
    %23 = arith.mulf %13, %22 : vector<8x128xf32>
    %cst_10 = arith.constant dense<0.000000e+00> : vector<128xf32>
    %24 = vector.multi_reduction <add>, %23, %cst_10 [0] : vector<8x128xf32> to vector<128xf32>
    %25 = vector.shape_cast %24 : vector<128xf32> to vector<1x128xf32>
    %26 = vector.extract_strided_slice %5 {offsets = [0, 2], sizes = [8, 1], strides = [1, 1]} : vector<8x4xf32> to vector<8x1xf32>
    %27 = vector.broadcast %26 : vector<8x1xf32> to vector<8x128xf32>
    %28 = arith.mulf %13, %27 : vector<8x128xf32>
    %cst_11 = arith.constant dense<0.000000e+00> : vector<128xf32>
    %29 = vector.multi_reduction <add>, %28, %cst_11 [0] : vector<8x128xf32> to vector<128xf32>
    %30 = vector.shape_cast %29 : vector<128xf32> to vector<1x128xf32>
    %31 = vector.extract_strided_slice %5 {offsets = [0, 3], sizes = [8, 1], strides = [1, 1]} : vector<8x4xf32> to vector<8x1xf32>
    %32 = vector.broadcast %31 : vector<8x1xf32> to vector<8x128xf32>
    %33 = arith.mulf %13, %32 : vector<8x128xf32>
    %cst_12 = arith.constant dense<0.000000e+00> : vector<128xf32>
    %34 = vector.multi_reduction <add>, %33, %cst_12 [0] : vector<8x128xf32> to vector<128xf32>
    %35 = vector.shape_cast %34 : vector<128xf32> to vector<1x128xf32>
    %cst_13 = arith.constant 9.99999993E-9 : f32
    %36 = vector.broadcast %cst_13 : f32 to vector<1x128xf32>
    %37 = arith.addf %15, %36 : vector<1x128xf32>
    %cst_14 = arith.constant 1.000000e+00 : f32
    %38 = vector.broadcast %cst_14 : f32 to vector<1x128xf32>
    %39 = arith.divf %38, %37 : vector<1x128xf32>
    %c0_15 = arith.constant 0 : index
    %c0_16 = arith.constant 0 : index
    %40 = vector.load %arg8[%c0_15, %c0_16] : memref<8x1xf32, #tpu.memory_space<vmem>>, vector<8x1xf32>
    %c0_17 = arith.constant 0 : index
    %c0_18 = arith.constant 0 : index
    %41 = vector.load %arg7[%c0_17, %c0_18] : memref<8x5xf32, #tpu.memory_space<vmem>>, vector<8x1xf32>
    %42 = vector.broadcast %41 : vector<8x1xf32> to vector<8x128xf32>
    %43 = vector.broadcast %15 : vector<1x128xf32> to vector<8x128xf32>
    %44 = arith.mulf %42, %43 : vector<8x128xf32>
    %45 = vector.broadcast %40 : vector<8x1xf32> to vector<8x128xf32>
    %46 = arith.addf %45, %44 : vector<8x128xf32>
    %c0_19 = arith.constant 0 : index
    %c1 = arith.constant 1 : index
    %47 = vector.load %arg7[%c0_19, %c1] : memref<8x5xf32, #tpu.memory_space<vmem>>, vector<8x1xf32>
    %48 = arith.mulf %20, %39 : vector<1x128xf32>
    %49 = vector.broadcast %47 : vector<8x1xf32> to vector<8x128xf32>
    %50 = vector.broadcast %48 : vector<1x128xf32> to vector<8x128xf32>
    %51 = arith.mulf %49, %50 : vector<8x128xf32>
    %52 = arith.addf %46, %51 : vector<8x128xf32>
    %c0_20 = arith.constant 0 : index
    %c2 = arith.constant 2 : index
    %53 = vector.load %arg7[%c0_20, %c2] : memref<8x5xf32, #tpu.memory_space<vmem>>, vector<8x1xf32>
    %54 = arith.mulf %25, %39 : vector<1x128xf32>
    %55 = vector.broadcast %53 : vector<8x1xf32> to vector<8x128xf32>
    %56 = vector.broadcast %54 : vector<1x128xf32> to vector<8x128xf32>
    %57 = arith.mulf %55, %56 : vector<8x128xf32>
    %58 = arith.addf %52, %57 : vector<8x128xf32>
    %c0_21 = arith.constant 0 : index
    %c3 = arith.constant 3 : index
    %59 = vector.load %arg7[%c0_21, %c3] : memref<8x5xf32, #tpu.memory_space<vmem>>, vector<8x1xf32>
    %60 = arith.mulf %30, %39 : vector<1x128xf32>
    %61 = vector.broadcast %59 : vector<8x1xf32> to vector<8x128xf32>
    %62 = vector.broadcast %60 : vector<1x128xf32> to vector<8x128xf32>
    %63 = arith.mulf %61, %62 : vector<8x128xf32>
    %64 = arith.addf %58, %63 : vector<8x128xf32>
    %c0_22 = arith.constant 0 : index
    %c4 = arith.constant 4 : index
    %65 = vector.load %arg7[%c0_22, %c4] : memref<8x5xf32, #tpu.memory_space<vmem>>, vector<8x1xf32>
    %66 = arith.mulf %35, %39 : vector<1x128xf32>
    %67 = vector.broadcast %65 : vector<8x1xf32> to vector<8x128xf32>
    %68 = vector.broadcast %66 : vector<1x128xf32> to vector<8x128xf32>
    %69 = arith.mulf %67, %68 : vector<8x128xf32>
    %70 = arith.addf %64, %69 : vector<8x128xf32>
    %c0_23 = arith.constant 0 : index
    %c0_24 = arith.constant 0 : index
    %c0_25 = arith.constant 0 : index
    %71 = vector.load %arg9[%c0_23, %c0_24, %c0_25] : memref<1x8x128xf32, #tpu.memory_space<vmem>>, vector<1x8x128xf32>
    %72 = vector.shape_cast %71 : vector<1x8x128xf32> to vector<8x128xf32>
    %73 = vector.shape_cast %70 : vector<8x128xf32> to vector<1x8x128xf32>
    tpu.vector_store %arg9[%c0_23, %c0_24, %c0_25], %73 {strides = array<i32>} : memref<1x8x128xf32, #tpu.memory_space<vmem>>, vector<1x8x128xf32>,
    return
  }
  func.func @transform_0(%arg0: i32, %arg1: i32, %arg2: i32) -> (i32, i32, i32) {
    %c0_i32 = arith.constant 0 : i32
    %c0_i32_0 = arith.constant 0 : i32
    return %arg0, %arg2, %c0_i32 : i32, i32, i32
  }
  func.func @transform_1(%arg0: i32, %arg1: i32, %arg2: i32) -> (i32, i32, i32) {
    %c0_i32 = arith.constant 0 : i32
    %c0_i32_0 = arith.constant 0 : i32
    return %arg0, %c0_i32, %arg1 : i32, i32, i32
  }
  func.func @transform_2(%arg0: i32, %arg1: i32, %arg2: i32) -> (i32, i32, i32) {
    %c0_i32 = arith.constant 0 : i32
    %c0_i32_0 = arith.constant 0 : i32
    return %arg0, %arg2, %c0_i32 : i32, i32, i32
  }
  func.func @transform_3(%arg0: i32, %arg1: i32, %arg2: i32) -> i32 {
    %c0_i32 = arith.constant 0 : i32
    %c0_i32_0 = arith.constant 0 : i32
    return %c0_i32 : i32
  }
  func.func @transform_4(%arg0: i32, %arg1: i32, %arg2: i32) -> (i32, i32) {
    %c0_i32 = arith.constant 0 : i32
    %c0_i32_0 = arith.constant 0 : i32
    %c0_i32_1 = arith.constant 0 : i32
    return %c0_i32, %c0_i32_0 : i32, i32
  }
  func.func @transform_5(%arg0: i32, %arg1: i32, %arg2: i32) -> (i32, i32) {
    %c0_i32 = arith.constant 0 : i32
    %c0_i32_0 = arith.constant 0 : i32
    %c0_i32_1 = arith.constant 0 : i32
    return %c0_i32, %c0_i32_0 : i32, i32
  }
  func.func @transform_6(%arg0: i32, %arg1: i32, %arg2: i32) -> (i32, i32, i32) {
    %c0_i32 = arith.constant 0 : i32
    %c0_i32_0 = arith.constant 0 : i32
    return %arg0, %c0_i32, %arg1 : i32, i32, i32
  }
}

</mosaic_0001>

<llo_original>
// kernel: tpu_custom_call.1
$region0: #{tpu_custom_call.1}
  #allocation0 [shape = 'u32[]', space=smem, size = 0x4, offset = 0x4, fixed_abs, tag = 'smem constant byte address 0x4 - core index']
  #allocation1 [shape = 'u32[72,128]{1,0:T(1,128)}', space=vmem, size = 0x9000, scoped, tag = 'internal scratch']
  #allocation2 [shape = 'f32[1,5,128]{2,1,0:T(8,128)}', space=vmem, size = 0x1000, scoped, tag = 'scratch operand']
  %s0 = inlined_call_operand.vmem [shape: f32[2,8,1], index: 0, kind: input, shape index: {}]
  %s1 = inlined_call_operand.vmem [shape: f32[2,1,128], index: 1, kind: input, shape index: {}]
  %s2 = inlined_call_operand.vmem [shape: f32[2,8,4], index: 2, kind: input, shape index: {}]
  %s3 = inlined_call_operand.vmem [shape: f32[5], index: 3, kind: input, shape index: {}]
  %s4 = inlined_call_operand.vmem [shape: f32[8,5], index: 4, kind: input, shape index: {}]
  %s5 = inlined_call_operand.vmem [shape: f32[8,1], index: 5, kind: input, shape index: {}]
  %s6 = inlined_call_operand.hbm [shape: f32[2,8,128], index: 6, kind: output, shape index: {}]
  %s7 = sld [smem:[#allocation0]]
  $region61: #{tpu_custom_call.1} parent=0
    _
  %s9 = ssub.s32 1, %s7
  %s10 = scalar_select 0, %s9, %s7
  $region1: #{tpu_custom_call.1} parent=0
    #allocation3 [shape = 'u8[512]{0}', space=smem, size = 0x200, scoped, tag = 'input window, operand 3, single buffered']
    #allocation4 [shape = 's32[2]{0}', space=sflag, size = 0x8, scoped, tag = 'scoped memory for tpu_custom_call.1']
    #allocation5 [shape = 's32[2]{0}', space=sflag, size = 0x8, scoped, tag = 'scoped memory for tpu_custom_call.1']
    #allocation6 [shape = 'u8[8192]{0}', space=vmem, size = 0x2000, scoped, tag = 'output window, operand 0']
    %11 = vsyncpa [#allocation5], 0
    %12 = vsyncpa [#allocation4], 0
    %s13 = scalar_lea.sflag [#allocation4], 1
    %14 = vsyncpa %s13, 0
    loop: start=0, step=1, limit=4
    $region2: #{tpu_custom_call.1} parent=1 // loop_pre_header
      _
    $region3: #{tpu_custom_call.1} parent=1 // loop_header
      %s16 = sphi 0, %s20
      %p17 = scmp.ge.s32.totalorder %s16, 4
      %s23 = sphi 0, %s42
      %s24 = sphi 0, %s38
      %s25 = sphi 0, %s34
      %s26 = sphi 0, %s23
      %s27 = sphi 0, %s24
      %s28 = sphi 0, %s25
      %s29 = sphi 0, %s26
      %s30 = sphi 0, %s27
      %s31 = sphi 0, %s28
      %s47 = sphi 0, %s49
      %s50 = sphi 0, %s47
      %s51 = sphi 0, %s50
      %s67 = sphi 0, %s51
      %s75 = sphi 0, %s77
      %s78 = sphi 0, %s75
      %s79 = sphi 0, %s78
      %s95 = sphi 0, %s79
      %s103 = sphi 0, %s105
      %s106 = sphi 0, %s103
      %s107 = sphi 0, %s106
      %s123 = sphi 0, %s107
      %s127 = sphi 0, %s127
      %s129 = sphi 0, %s127
      %s130 = sphi 0, %s129
      %s144 = sphi 0, %s130
      %s148 = sphi 0, %s148
      %s150 = sphi 0, %s148
      %s151 = sphi 0, %s150
      %s165 = sphi 0, %s151
      %s169 = sphi 0, %s169
      %s171 = sphi 0, %s169
      %s172 = sphi 0, %s171
      %s186 = sphi 0, %s172
      %s194 = sphi 0, %s196
      %s197 = sphi 0, %s194
      %s198 = sphi 0, %s197
      %s214 = sphi 0, %s198
    $region4: #{tpu_custom_call.1} parent=1 // loop_header_branch
      %19 = sbr.rel (%p17) target = $region8
    $region5: #{tpu_custom_call.1} parent=1 // loop_body
      %s21 = ssub.s32 %s16, 1
      %s22 = ssub.s32 %s16, 2
      %s32 = sadd.s32 1, %s25
      %p33 = scmp.ge.s32.totalorder %s32, 1
      %s34 = scalar_select %p33, 0, %s32
      %s35 = sadd.s32 1, %s24
      %s36 = scalar_select %p33, %s35, %s24
      %p37 = scmp.ge.s32.totalorder %s36, 1
      %s38 = scalar_select %p37, 0, %s36
      %s39 = sadd.s32 1, %s23
      %s40 = scalar_select %p37, %s39, %s23
      %p41 = scmp.ge.s32.totalorder %s40, 2
      %s42 = scalar_select %p41, 0, %s40
      %s43 = ssub.s32 %s23, %s42
      %s44 = ssub.s32 %s25, %s34
      %s45 = sor.u32 %s43, %s44
      %p46 = scmp.eq.s32.totalorder %s45, 0
      %s48 = sadd.s32 %s47, 1
      %s49 = scalar_select %p46, %s47, %s48
      %p52 = pneg %p46
      %p53 = scmp.eq.s32.totalorder %s16, 1
      %p54 = por %p52, %p53
      %p55 = scmp.ne.s32.totalorder %s47, %s50
      %p56 = scmp.eq.s32.totalorder %s16, 0
      %p57 = por %p55, %p56
      %p58 = scmp.ne.s32.totalorder %s47, %s50
      %p59 = scmp.eq.s32.totalorder %s21, 1
      %p60 = por %p58, %p59
      %p61 = scmp.ne.s32.totalorder %s50, %s51
      %p62 = scmp.eq.s32.totalorder %s21, 0
      %p63 = por %p61, %p62
      %p64 = scmp.ne.s32.totalorder %s50, %s51
      %p65 = scmp.eq.s32.totalorder %s22, 1
      %p66 = por %p64, %p65
      %p68 = scmp.ne.s32.totalorder %s51, %s67
      %p69 = scmp.eq.s32.totalorder %s22, 0
      %p70 = por %p68, %p69
      %s71 = ssub.s32 %s23, %s42
      %s72 = ssub.s32 %s24, %s38
      %s73 = sor.u32 %s71, %s72
      %p74 = scmp.eq.s32.totalorder %s73, 0
      %s76 = sadd.s32 %s75, 1
      %s77 = scalar_select %p74, %s75, %s76
      %p80 = pneg %p74
      %p81 = scmp.eq.s32.totalorder %s16, 1
      %p82 = por %p80, %p81
      %p83 = scmp.ne.s32.totalorder %s75, %s78
      %p84 = scmp.eq.s32.totalorder %s16, 0
      %p85 = por %p83, %p84
      %p86 = scmp.ne.s32.totalorder %s75, %s78
      %p87 = scmp.eq.s32.totalorder %s21, 1
      %p88 = por %p86, %p87
      %p89 = scmp.ne.s32.totalorder %s78, %s79
      %p90 = scmp.eq.s32.totalorder %s21, 0
      %p91 = por %p89, %p90
      %p92 = scmp.ne.s32.totalorder %s78, %s79
      %p93 = scmp.eq.s32.totalorder %s22, 1
      %p94 = por %p92, %p93
      %p96 = scmp.ne.s32.totalorder %s79, %s95
      %p97 = scmp.eq.s32.totalorder %s22, 0
      %p98 = por %p96, %p97
      %s99 = ssub.s32 %s23, %s42
      %s100 = ssub.s32 %s25, %s34
      %s101 = sor.u32 %s99, %s100
      %p102 = scmp.eq.s32.totalorder %s101, 0
      %s104 = sadd.s32 %s103, 1
      %s105 = scalar_select %p102, %s103, %s104
      %p108 = pneg %p102
      %p109 = scmp.eq.s32.totalorder %s16, 1
      %p110 = por %p108, %p109
      %p111 = scmp.ne.s32.totalorder %s103, %s106
      %p112 = scmp.eq.s32.totalorder %s16, 0
      %p113 = por %p111, %p112
      %p114 = scmp.ne.s32.totalorder %s103, %s106
      %p115 = scmp.eq.s32.totalorder %s21, 1
      %p116 = por %p114, %p115
      %p117 = scmp.ne.s32.totalorder %s106, %s107
      %p118 = scmp.eq.s32.totalorder %s21, 0
      %p119 = por %p117, %p118
      %p120 = scmp.ne.s32.totalorder %s106, %s107
      %p121 = scmp.eq.s32.totalorder %s22, 1
      %p122 = por %p120, %p121
      %p124 = scmp.ne.s32.totalorder %s107, %s123
      %p125 = scmp.eq.s32.totalorder %s22, 0
      %p126 = por %p124, %p125
      %s128 = sadd.s32 %s127, 1
      %p131 = scmp.eq.s32.totalorder %s16, 1
      %p132 = scmp.ne.s32.totalorder %s127, %s129
      %p133 = scmp.eq.s32.totalorder %s16, 0
      %p134 = por %p132, %p133
      %p135 = scmp.ne.s32.totalorder %s127, %s129
      %p136 = scmp.eq.s32.totalorder %s21, 1
      %p137 = por %p135, %p136
      %p138 = scmp.ne.s32.totalorder %s129, %s130
      %p139 = scmp.eq.s32.totalorder %s21, 0
      %p140 = por %p138, %p139
      %p141 = scmp.ne.s32.totalorder %s129, %s130
      %p142 = scmp.eq.s32.totalorder %s22, 1
      %p143 = por %p141, %p142
      %p145 = scmp.ne.s32.totalorder %s130, %s144
      %p146 = scmp.eq.s32.totalorder %s22, 0
      %p147 = por %p145, %p146
      %s149 = sadd.s32 %s148, 1
      %p152 = scmp.eq.s32.totalorder %s16, 1
      %p153 = scmp.ne.s32.totalorder %s148, %s150
      %p154 = scmp.eq.s32.totalorder %s16, 0
      %p155 = por %p153, %p154
      %p156 = scmp.ne.s32.totalorder %s148, %s150
      %p157 = scmp.eq.s32.totalorder %s21, 1
      %p158 = por %p156, %p157
      %p159 = scmp.ne.s32.totalorder %s150, %s151
      %p160 = scmp.eq.s32.totalorder %s21, 0
      %p161 = por %p159, %p160
      %p162 = scmp.ne.s32.totalorder %s150, %s151
      %p163 = scmp.eq.s32.totalorder %s22, 1
      %p164 = por %p162, %p163
      %p166 = scmp.ne.s32.totalorder %s151, %s165
      %p167 = scmp.eq.s32.totalorder %s22, 0
      %p168 = por %p166, %p167
      %s170 = sadd.s32 %s169, 1
      %p173 = scmp.eq.s32.totalorder %s16, 1
      %p174 = scmp.ne.s32.totalorder %s169, %s171
      %p175 = scmp.eq.s32.totalorder %s16, 0
      %p176 = por %p174, %p175
      %p177 = scmp.ne.s32.totalorder %s169, %s171
      %p178 = scmp.eq.s32.totalorder %s21, 1
      %p179 = por %p177, %p178
      %p180 = scmp.ne.s32.totalorder %s171, %s172
      %p181 = scmp.eq.s32.totalorder %s21, 0
      %p182 = por %p180, %p181
      %p183 = scmp.ne.s32.totalorder %s171, %s172
      %p184 = scmp.eq.s32.totalorder %s22, 1
      %p185 = por %p183, %p184
      %p187 = scmp.ne.s32.totalorder %s172, %s186
      %p188 = scmp.eq.s32.totalorder %s22, 0
      %p189 = por %p187, %p188
      %s190 = ssub.s32 %s23, %s42
      %s191 = ssub.s32 %s24, %s38
      %s192 = sor.u32 %s190, %s191
      %p193 = scmp.eq.s32.totalorder %s192, 0
      %s195 = sadd.s32 %s194, 1
      %s196 = scalar_select %p193, %s194, %s195
      %p199 = pneg %p193
      %p200 = scmp.eq.s32.totalorder %s16, 1
      %p201 = por %p199, %p200
      %p202 = scmp.ne.s32.totalorder %s194, %s197
      %p203 = scmp.eq.s32.totalorder %s16, 0
      %p204 = por %p202, %p203
      %p205 = scmp.ne.s32.totalorder %s194, %s197
      %p206 = scmp.eq.s32.totalorder %s21, 1
      %p207 = por %p205, %p206
      %p208 = scmp.ne.s32.totalorder %s197, %s198
      %p209 = scmp.eq.s32.totalorder %s21, 0
      %p210 = por %p208, %p209
      %p211 = scmp.ne.s32.totalorder %s197, %s198
      %p212 = scmp.eq.s32.totalorder %s22, 1
      %p213 = por %p211, %p212
      %p215 = scmp.ne.s32.totalorder %s198, %s214
      %p216 = scmp.eq.s32.totalorder %s22, 0
      %p217 = por %p215, %p216
      %p218 = scmp.le.s32.totalorder 1, %s16
      %p219 = scmp.lt.s32.totalorder %s16, 3
      %p220 = pnand %p218, %p219
      %p221 = pneg %p220
      // Predicated region
      $region9: #{tpu_custom_call.1} parent=5 // pred_check
        _
      $region10: #{tpu_custom_call.1} parent=5 // pred_check_branch
        %223 = sbr.rel (%p220) target = $region12
      $region11: #{tpu_custom_call.1} parent=5 // pred_region
        %s224 = ssub.s32 %s16, 1
        // Predicated region
        $region13: #{tpu_custom_call.1} parent=11 // pred_check
          %p225 = pneg %p140
        $region14: #{tpu_custom_call.1} parent=11 // pred_check_branch
          %227 = sbr.rel (%p225) target = $region16
        $region15: #{tpu_custom_call.1} parent=11 // pred_region
          %229 = vsyncadd [#allocation5], 0
          %s231 = sshll.u32 %s3, 4
          %s232 = int_to_ptr.vmem [resolvable:$true] %s231
          %234 = dma.vmem_to_smem %s232, 16, [#allocation3], [#allocation5]
        $region16: #{tpu_custom_call.1} parent=11 // pred_fallthru
          _
        // Predicated region
        $region17: #{tpu_custom_call.1} parent=11 // pred_check
          %p235 = pneg %p161
        $region18: #{tpu_custom_call.1} parent=11 // pred_check_branch
          %237 = sbr.rel (%p235) target = $region20
        $region19: #{tpu_custom_call.1} parent=11 // pred_region
          _
        $region20: #{tpu_custom_call.1} parent=11 // pred_fallthru
          _
        // Predicated region
        $region21: #{tpu_custom_call.1} parent=11 // pred_check
          %p238 = pneg %p182
        $region22: #{tpu_custom_call.1} parent=11 // pred_check_branch
          %240 = sbr.rel (%p238) target = $region24
        $region23: #{tpu_custom_call.1} parent=11 // pred_region
          _
        $region24: #{tpu_custom_call.1} parent=11 // pred_fallthru
          _
      $region12: #{tpu_custom_call.1} parent=5 // pred_fallthru
        _
      %p241 = scmp.lt.s32.totalorder %s16, 2
      // Predicated region
      $region25: #{tpu_custom_call.1} parent=5 // pred_check
        %p242 = pneg %p241
      $region26: #{tpu_custom_call.1} parent=5 // pred_check_branch
        %244 = sbr.rel (%p242) target = $region28
      $region27: #{tpu_custom_call.1} parent=5 // pred_region
        // Predicated region
        $region29: #{tpu_custom_call.1} parent=27 // pred_check
          %p245 = pneg %p57
        $region30: #{tpu_custom_call.1} parent=27 // pred_check_branch
          %247 = sbr.rel (%p245) target = $region32
        $region31: #{tpu_custom_call.1} parent=27 // pred_region
          %p248 = scmp.lt.s32.totalorder %s23, 1
          %s249 = scalar_select %p248, %s23, 1
          %p250 = scmp.lt.s32.totalorder %s25, 0
          %s251 = scalar_select %p250, %s25, 0
          %s252 = sadd.s32 %s251, %s249
          %s253 = smul.addr %s252, 8
          %s254 = scalar_lea.vmem %s0, %s253
        $region32: #{tpu_custom_call.1} parent=27 // pred_fallthru
          _
        // Predicated region
        $region33: #{tpu_custom_call.1} parent=27 // pred_check
          %p255 = pneg %p85
        $region34: #{tpu_custom_call.1} parent=27 // pred_check_branch
          %257 = sbr.rel (%p255) target = $region36
        $region35: #{tpu_custom_call.1} parent=27 // pred_region
          %p258 = scmp.lt.s32.totalorder %s23, 1
          %s259 = scalar_select %p258, %s23, 1
          %p260 = scmp.lt.s32.totalorder %s24, 0
          %s261 = scalar_select %p260, %s24, 0
          %s262 = sadd.s32 %s261, %s259
          %s263 = scalar_lea.vmem %s1, %s262
        $region36: #{tpu_custom_call.1} parent=27 // pred_fallthru
          _
        // Predicated region
        $region37: #{tpu_custom_call.1} parent=27 // pred_check
          %p264 = pneg %p113
        $region38: #{tpu_custom_call.1} parent=27 // pred_check_branch
          %266 = sbr.rel (%p264) target = $region40
        $region39: #{tpu_custom_call.1} parent=27 // pred_region
          %p267 = scmp.lt.s32.totalorder %s23, 1
          %s268 = scalar_select %p267, %s23, 1
          %p269 = scmp.lt.s32.totalorder %s25, 0
          %s270 = scalar_select %p269, %s25, 0
          %s271 = sadd.s32 %s270, %s268
          %s272 = smul.addr %s271, 8
          %s273 = scalar_lea.vmem %s2, %s272
        $region40: #{tpu_custom_call.1} parent=27 // pred_fallthru
          _
      $region28: #{tpu_custom_call.1} parent=5 // pred_fallthru
        _
      %p274 = scmp.le.s32.totalorder 1, %s16
      %p275 = scmp.lt.s32.totalorder %s16, 3
      %p276 = pnand %p274, %p275
      %p277 = pneg %p276
      // Predicated region
      $region41: #{tpu_custom_call.1} parent=5 // pred_check
        _
      $region42: #{tpu_custom_call.1} parent=5 // pred_check_branch
        %279 = sbr.rel (%p276) target = $region44
      $region43: #{tpu_custom_call.1} parent=5 // pred_region
        %s280 = ssub.s32 %s16, 1
        // Predicated region
        $region45: #{tpu_custom_call.1} parent=43 // pred_check
          %p281 = pneg %p140
        $region46: #{tpu_custom_call.1} parent=43 // pred_check_branch
          %283 = sbr.rel (%p281) target = $region48
        $region47: #{tpu_custom_call.1} parent=43 // pred_region
          %285 = dma.done [#allocation5], 16
        $region48: #{tpu_custom_call.1} parent=43 // pred_fallthru
          _
        %286 = sfence
        %p287 = scmp.lt.s32.totalorder %s26, 1
        %s288 = scalar_select %p287, %s26, 1
        %p289 = scmp.lt.s32.totalorder %s28, 0
        %s290 = scalar_select %p289, %s28, 0
        %s291 = sadd.s32 %s290, %s288
        %s292 = smul.addr %s291, 8
        %s293 = scalar_lea.vmem %s0, %s292
        %p294 = pneg %p63
        %p295 = pneg %p60
        %p296 = scmp.lt.s32.totalorder %s26, 1
        %s297 = scalar_select %p296, %s26, 1
        %p298 = scmp.lt.s32.totalorder %s27, 0
        %s299 = scalar_select %p298, %s27, 0
        %s300 = sadd.s32 %s299, %s297
        %s301 = scalar_lea.vmem %s1, %s300
        %p302 = pneg %p91
        %p303 = pneg %p88
        %p304 = scmp.lt.s32.totalorder %s26, 1
        %s305 = scalar_select %p304, %s26, 1
        %p306 = scmp.lt.s32.totalorder %s28, 0
        %s307 = scalar_select %p306, %s28, 0
        %s308 = sadd.s32 %s307, %s305
        %s309 = smul.addr %s308, 8
        %s310 = scalar_lea.vmem %s2, %s309
        %p311 = pneg %p119
        %p312 = pneg %p116
        %p313 = pneg %p140
        %p314 = pneg %p137
        %p315 = pneg %p161
        %p316 = pneg %p158
        %p317 = pneg %p182
        %p318 = pneg %p179
        %p319 = pneg %p210
        %p320 = pneg %p207
        %s321 = sand.u32 %s197, 1
        %s322 = scalar_lea.sflag [#allocation4], %s321
        %s323 = sand.u32 %s197, 1
        %s324 = smul.addr %s323, 8
        %s325 = scalar_lea.vmem [#allocation6], %s324
        %p326 = scmp.lt.s32.totalorder %s26, 1
        %s327 = scalar_select %p326, %s26, 1
        %p328 = scmp.lt.s32.totalorder %s28, 0
        %s329 = scalar_select %p328, %s28, 0
        %s330 = sadd.s32 %s329, %s327
        %s331 = smul.addr %s330, 8
        %s332 = scalar_lea.vmem %s0, %s331
        %p333 = scmp.lt.s32.totalorder %s26, 1
        %s334 = scalar_select %p333, %s26, 1
        %p335 = scmp.lt.s32.totalorder %s27, 0
        %s336 = scalar_select %p335, %s27, 0
        %s337 = sadd.s32 %s336, %s334
        %s338 = scalar_lea.vmem %s1, %s337
        %p339 = scmp.lt.s32.totalorder %s26, 1
        %s340 = scalar_select %p339, %s26, 1
        %p341 = scmp.lt.s32.totalorder %s28, 0
        %s342 = scalar_select %p341, %s28, 0
        %s343 = sadd.s32 %s342, %s340
        %s344 = smul.addr %s343, 8
        %s345 = scalar_lea.vmem %s2, %s344
        %v346 = vld [vmem:[%s332] sm:$0xff]
        %v347 = vld [vmem:[%s338] sm:$0x1]
        %v348 = vld [vmem:[%s345] sm:$0xff]
        %350 = vset.pattern.permute.xlu0 0
        %351 = vperm.xlu0 %350, %v346
        %v352 = vpop.permute.xlu0 %351
        %v355 = vperm.slane %v347, 0
        %v357 = vsub.f32 %v352, %v355
        %v358 = vmul.f32 %v357, %v357
        %s359 = sld [smem:[#allocation3]]
        %v360 = vstv %s359
        %v361 = vmul.f32 %v358, %v360
        %v362 = vmul.f32 %v361, 1.442695
        %v363 = vpow.pop %v362
        %v364 = vrot.slane %v363, 4
        %v365 = vadd.f32 %v363, %v364
        %v366 = vrot.slane %v365, 2
        %v367 = vadd.f32 %v365, %v366
        %v368 = vrot.slane %v367, 1
        %v369 = vadd.f32 %v367, %v368
        %371 = vset.pattern.permute.xlu0 0
        %372 = vperm.xlu0 %371, %v348
        %v373 = vpop.permute.xlu0 %372
        %v375 = vmul.f32 %v363, %v373
        %v376 = vrot.slane %v375, 4
        %v377 = vadd.f32 %v375, %v376
        %v378 = vrot.slane %v377, 2
        %v379 = vadd.f32 %v377, %v378
        %v380 = vrot.slane %v379, 1
        %v381 = vadd.f32 %v379, %v380
        %382 = vset.pattern.permute.xlu0 1
        %383 = vperm.xlu0 %382, %v348
        %v384 = vpop.permute.xlu0 %383
        %v386 = vmul.f32 %v363, %v384
        %v387 = vrot.slane %v386, 4
        %v388 = vadd.f32 %v386, %v387
        %v389 = vrot.slane %v388, 2
        %v390 = vadd.f32 %v388, %v389
        %v391 = vrot.slane %v390, 1
        %v392 = vadd.f32 %v390, %v391
        %393 = vset.pattern.permute.xlu0 2
        %394 = vperm.xlu0 %393, %v348
        %v395 = vpop.permute.xlu0 %394
        %v397 = vmul.f32 %v363, %v395
        %v398 = vrot.slane %v397, 4
        %v399 = vadd.f32 %v397, %v398
        %v400 = vrot.slane %v399, 2
        %v401 = vadd.f32 %v399, %v400
        %v402 = vrot.slane %v401, 1
        %v403 = vadd.f32 %v401, %v402
        %404 = vset.pattern.permute.xlu0 3
        %405 = vperm.xlu0 %404, %v348
        %v406 = vpop.permute.xlu0 %405
        %v408 = vmul.f32 %v363, %v406
        %v409 = vrot.slane %v408, 4
        %v410 = vadd.f32 %v408, %v409
        %v411 = vrot.slane %v410, 2
        %v412 = vadd.f32 %v410, %v411
        %v413 = vrot.slane %v412, 1
        %v414 = vadd.f32 %v412, %v413
        %v415 = vadd.f32 %v369, 1e-08
        %v416 = vrcp.pop %v415
        %v417 = vmul.f32 %v415, %v416
        %v418 = vsub.f32 1.0, %v417
        %v419 = vmul.f32 %v416, %v418
        %v420 = vadd.f32 %v416, %v419
        %vm421 = vweird.f32 %v415
        %vm422 = vweird.f32 %v416
        %vm423 = vmor %vm421, %vm422
        %v424 = vsel %vm423, %v416, %v420
        %v425 = vand.u32 2147483647, %v415
        %vm426 = vcmp.eq.f32.partialorder %v425, 8.507059e+37
        %v427 = vand.u32 %v415, 2147483648
        %v428 = vor.u32 1.1754944e-38, %v427
        %v429 = vsel %vm426, %v428, %v424
        %v430 = vmul.f32 1.0, %v429
        %v431 = vld [vmem:[%s5] sm:$0xff]
        %v432 = vld [vmem:[%s4] sm:$0xff]
        %434 = vset.pattern.permute.xlu0 0
        %435 = vperm.xlu0 %434, %v432
        %v436 = vpop.permute.xlu0 %435
        %v438 = vmul.f32 %v436, %v369
        %440 = vset.pattern.permute.xlu0 0
        %441 = vperm.xlu0 %440, %v431
        %v442 = vpop.permute.xlu0 %441
        %v444 = vadd.f32 %v442, %v438
        %v445 = vmul.f32 %v381, %v430
        %446 = vset.pattern.permute.xlu0 1
        %447 = vperm.xlu0 %446, %v432
        %v448 = vpop.permute.xlu0 %447
        %v450 = vmul.f32 %v448, %v445
        %v451 = vadd.f32 %v444, %v450
        %v452 = vmul.f32 %v392, %v430
        %453 = vset.pattern.permute.xlu0 2
        %454 = vperm.xlu0 %453, %v432
        %v455 = vpop.permute.xlu0 %454
        %v457 = vmul.f32 %v455, %v452
        %v458 = vadd.f32 %v451, %v457
        %v459 = vmul.f32 %v403, %v430
        %460 = vset.pattern.permute.xlu0 3
        %461 = vperm.xlu0 %460, %v432
        %v462 = vpop.permute.xlu0 %461
        %v464 = vmul.f32 %v462, %v459
        %v465 = vadd.f32 %v458, %v464
        %v466 = vmul.f32 %v414, %v430
        %467 = vset.pattern.permute.xlu0 4
        %468 = vperm.xlu0 %467, %v432
        %v469 = vpop.permute.xlu0 %468
        %v471 = vmul.f32 %v469, %v466
        %v472 = vadd.f32 %v465, %v471
        %473 = vst [vmem:[%s325] sm:$0xff] %v472
        %s474 = sand.u32 %s197, 1
        %s475 = scalar_lea.sflag [#allocation4], %s474
        %s476 = sand.u32 %s197, 1
        %s477 = smul.addr %s476, 8
        %s478 = scalar_lea.vmem [#allocation6], %s477
        // Predicated region
        $region49: #{tpu_custom_call.1} parent=43 // pred_check
          %p479 = pneg %p207
        $region50: #{tpu_custom_call.1} parent=43 // pred_check_branch
          %481 = sbr.rel (%p479) target = $region52
        $region51: #{tpu_custom_call.1} parent=43 // pred_region
          %483 = vsyncadd %s475, 0
          %s484 = sadd.s32 %s27, %s26
          %s485 = smul.addr %s484, 8
          %s486 = scalar_lea.hbm %s6, %s485
          %s488 = sshll.u32 %s478, 4
          %s489 = int_to_ptr.vmem [resolvable:$true] %s488
          %s490 = sshll.u32 %s486, 4
          %s491 = int_to_ptr.hbm [resolvable:$true] %s490
          %493 = dma.vmem_to_hbm [thread:$0]  %s489, 128, %s491, %s475
        $region52: #{tpu_custom_call.1} parent=43 // pred_fallthru
          _
      $region44: #{tpu_custom_call.1} parent=5 // pred_fallthru
        _
      %p494 = scmp.le.s32.totalorder 2, %s16
      // Predicated region
      $region53: #{tpu_custom_call.1} parent=5 // pred_check
        %p495 = pneg %p494
      $region54: #{tpu_custom_call.1} parent=5 // pred_check_branch
        %497 = sbr.rel (%p495) target = $region56
      $region55: #{tpu_custom_call.1} parent=5 // pred_region
        %s498 = ssub.s32 %s16, 2
        // Predicated region
        $region57: #{tpu_custom_call.1} parent=55 // pred_check
          %p499 = pneg %p213
        $region58: #{tpu_custom_call.1} parent=55 // pred_check_branch
          %501 = sbr.rel (%p499) target = $region60
        $region59: #{tpu_custom_call.1} parent=55 // pred_region
          %s502 = sand.u32 %s198, 1
          %s503 = scalar_lea.sflag [#allocation4], %s502
          %s504 = sand.u32 %s198, 1
          %s505 = smul.addr %s504, 8
          %s506 = scalar_lea.vmem [#allocation6], %s505
          %508 = dma.done %s503, 128
        $region60: #{tpu_custom_call.1} parent=55 // pred_fallthru
          _
      $region56: #{tpu_custom_call.1} parent=5 // pred_fallthru
        _
    $region6: #{tpu_custom_call.1} parent=1 // loop_footer
      %s20 = sadd.s32 1, %s16
    $region7: #{tpu_custom_call.1} parent=1 // loop_footer_branch
      %15 = sbr.rel target = $region3
    $region8: #{tpu_custom_call.1} parent=1 // loop_exit
      _
    %509 = vsyncpa [#allocation4], 1
    %s510 = scalar_lea.sflag [#allocation4], 1
    %511 = vsyncpa %s510, 1
    %512 = vsyncpa [#allocation5], 1
    %s513 = scalar_lea.sflag [#allocation5], 1
    %514 = vsyncpa %s513, 1

</llo_original>
